<compile_context>
chip_gen: v7x
topology: tpu7x:2x2x1
jax: 0.10.0
libtpu: 0.0.40
codegen_flags: <defaults>
</compile_context>

<pallas_src>
import jax
import jax.numpy as jnp
from jax.experimental import pallas as pl
from jax.experimental.pallas import tpu as pltpu

_MIB = 1024 * 1024


# ----------------------------- kernels ---------------------------------------


def _embedding_kernel(x_ref, w_ref, b_ref, o_ref):
    # Unfolded path (D >= 128):  o[b, n, :] = x[b, n] * W[n, :] + bias[n, :]
    x = x_ref[...].astype(jnp.float32)          # [tB, tN]
    w = w_ref[...].astype(jnp.float32)          # [tN, D]
    b = b_ref[...].astype(jnp.float32)          # [tN, D]
    out = x[:, :, None] * w[None, :, :] + b[None, :, :]
    o_ref[...] = out.astype(o_ref.dtype)


def _embedding_kernel_folded(x_ref, e_ref, w_ref, b_ref, o_ref):
    # Folded path (D < 128): output laid out as [B, N*D] (lane-dense stores).
    # x_rep[b, n*D+d] = x[b, n] is built with one MXU matmul against the constant
    # 0/1 expansion matrix E[n, n*D+d] = 1 — no in-kernel reshape/relayout, exact f32.
    x = x_ref[...].astype(jnp.float32)                                   # [tB, tN]
    x_rep = jnp.dot(x, e_ref[...], preferred_element_type=jnp.float32)   # [tB, tN*D]
    w = w_ref[...].astype(jnp.float32)                                   # [1, tN*D]
    b = b_ref[...].astype(jnp.float32)                                   # [1, tN*D]
    o_ref[...] = (x_rep * w + b).astype(o_ref.dtype)


# ----------------------------- tiling / budget --------------------------------


def _vmem_limit_bytes():
    """~75% of per-core VMEM: 48 MiB on v7x, 96 MiB on v5e/v6e."""
    try:
        cap = int(pltpu.get_tpu_info().vmem_capacity_bytes)
    except Exception:
        cap = 64 * _MIB  # conservative fallback: assume the smallest generation (v7x)
    return cap * 3 // 4


def _round8_down(v):
    return max(8, (v // 8) * 8)


def _choose_tiles(B, N, D, out_itemsize, target_bytes, folded):
    if folded:
        # tN bounds the expansion matrix (tN x tN*D) and the MXU MACs/element.
        tN = N if N <= 128 else 128
    else:
        tN = N if N <= 512 else 512
        # Shrink tN (multiples of 128) if even 8 rows of a tile would blow the target.
        while tN > 128 and 8 * tN * D * out_itemsize > target_bytes:
            tN -= 128
    row_bytes = max(1, tN * D * out_itemsize)
    rows = max(1, target_bytes // row_bytes)
    tB = B if B <= rows else _round8_down(rows)
    # v7x megacore: guarantee >=2 grid steps so both TensorCores get work.
    # (On 1-TC v5e/v6e this adds one ~0.35us grid step — negligible.)
    if pl.cdiv(N, tN) * pl.cdiv(B, tB) < 2 and B >= 16:
        tB = _round8_down(pl.cdiv(B, 2))
    return tB, tN


# ----------------------------- wrapper ----------------------------------------


def embedding_forward(x, weights, biases, *, out_dtype=None, block_b=None, block_n=None):
    """x: [B, N, 1] (or [B, N]); weights, biases: [N, D]  ->  [B, N, D]."""
    x2d = jnp.squeeze(x, axis=-1) if x.ndim == 3 else x
    B, N = x2d.shape
    Nw, D = weights.shape
    assert Nw == N and biases.shape == (N, D)

    out_dtype = jnp.dtype(out_dtype if out_dtype is not None else x.dtype)
    itemsize = out_dtype.itemsize

    vmem_limit = _vmem_limit_bytes()
    # 8-16 MiB output blocks keep per-step overhead <=5-10% of the DMA drain time while
    # 2x(out block) + resident E/W/bias stays well inside the budget.
    target_bytes = max(4 * _MIB, min(16 * _MIB, vmem_limit // 6))

    # Lane-dense fold only when the N tiling is exact (no padded x can leak via the MXU).
    folded = (D < 128) and (N <= 128 or N % 128 == 0)
    tB, tN = _choose_tiles(B, N, D, itemsize, target_bytes, folded)

    # Validate user overrides against the (8,128) rule and the VMEM budget.
    if block_n is not None:
        if block_n != N and block_n % 128 != 0:
            raise ValueError("block_n must equal N or be a multiple of 128")
        tN = block_n
    if block_b is not None:
        if block_b != B and block_b % 8 != 0:
            raise ValueError("block_b must equal B or be a multiple of 8")
        tB = block_b
    if block_n is not None or block_b is not None:
        if 2 * tB * tN * D * itemsize > vmem_limit:
            raise ValueError(
                f"requested blocks exceed VMEM budget: "
                f"{2 * tB * tN * D * itemsize} > {vmem_limit} bytes")

    # N outer, B inner: W/bias (and E) block indices are B-invariant -> DMA'd once per
    # N tile, resident across all batch tiles.  Both axes are independent writes.
    grid = (pl.cdiv(N, tN), pl.cdiv(B, tB))
    cparams = pltpu.CompilerParams(
        dimension_semantics=("parallel", "parallel"),
        vmem_limit_bytes=vmem_limit,
    )

    if folded:
        K = N * D
        w_flat = weights.reshape(1, K)   # row-major: w_flat[0, n*D+d] = W[n, d] (free)
        b_flat = biases.reshape(1, K)
        # Constant expansion matrix E[n, n*D + d] = 1 (grid-constant block -> one DMA).
        expand = jnp.kron(jnp.eye(tN, dtype=jnp.float32),
                          jnp.ones((1, D), dtype=jnp.float32))
        out2d = pl.pallas_call(
            _embedding_kernel_folded,
            out_shape=jax.ShapeDtypeStruct((B, K), out_dtype),
            grid=grid,
            in_specs=[
                pl.BlockSpec((tB, tN), lambda j, i: (i, j)),       # x       [B, N]
                pl.BlockSpec((tN, tN * D), lambda j, i: (0, 0)),   # E       (constant)
                pl.BlockSpec((1, tN * D), lambda j, i: (0, j)),    # W flat  (B-invariant)
                pl.BlockSpec((1, tN * D), lambda j, i: (0, j)),    # b flat  (B-invariant)
            ],
            out_specs=pl.BlockSpec((tB, tN * D), lambda j, i: (i, j)),
            compiler_params=cparams,
        )(x2d, expand, w_flat, b_flat)
        return out2d.reshape(B, N, D)      # contiguous -> free

    return pl.pallas_call(
        _embedding_kernel,
        out_shape=jax.ShapeDtypeStruct((B, N, D), out_dtype),
        grid=grid,
        in_specs=[
            pl.BlockSpec((tB, tN), lambda j, i: (i, j)),   # x    [B, N]
            pl.BlockSpec((tN, D), lambda j, i: (j, 0)),    # W    [N, D] (B-invariant)
            pl.BlockSpec((tN, D), lambda j, i: (j, 0)),    # bias [N, D] (B-invariant)
        ],
        out_specs=pl.BlockSpec((tB, tN, D), lambda j, i: (i, j, 0)),
        compiler_params=cparams,
    )(x2d, weights, biases)


# ----------------------------- params / reference -----------------------------


def init_params(key, d_model, num_neurons, dtype=jnp.float32):
    # PyTorch nn.Linear(1, d_model) init: U(-1/sqrt(in_features), +1/sqrt(..)) = U(-1, 1)
    kw, kb = jax.random.split(key)
    weights = jax.random.uniform(kw, (num_neurons, d_model), dtype, minval=-1.0, maxval=1.0)
    biases = jax.random.uniform(kb, (num_neurons, d_model), dtype, minval=-1.0, maxval=1.0)
    return weights, biases


def reference_forward(x, weights, biases):
    # pure-JAX reference of the torch forward: x [B, N, 1] * W [N, D] + b [N, D]
    return x * weights[None, :, :] + biases[None, :, :]


if __name__ == "__main__":
    key = jax.random.PRNGKey(0)

    # 1) Shapes implied by the torch module (toy): batch=2, num_neurons=4, d_model=32.
    #    Exercises the folded (lane-dense [B, N*D]) path at tiny size.
    d_model, num_neurons, batch = 32, 4, 2
    kp, kx = jax.random.split(key)
    weights, biases = init_params(kp, d_model, num_neurons)
    x = jax.random.normal(kx, (batch, num_neurons, 1), dtype=jnp.float32)
    out = jax.block_until_ready(embedding_forward(x, weights, biases))
    ref = reference_forward(x, weights, biases)
    assert out.shape == (batch, num_neurons, d_model)
    assert jnp.allclose(out, ref, atol=1e-5, rtol=1e-5)

    # 2) Unfolded path (D multiple of 128): multi-step grid, W/bias resident across B
    #    tiles, >=2-grid-step split for megacore.
    B2, N2, D2 = 16, 256, 128
    k1, k2, k3 = jax.random.split(jax.random.PRNGKey(1), 3)
    w2 = jax.random.uniform(k1, (N2, D2), jnp.float32, minval=-1.0, maxval=1.0)
    b2 = jax.random.uniform(k2, (N2, D2), jnp.float32, minval=-1.0, maxval=1.0)
    x2 = jax.random.normal(k3, (B2, N2, 1), dtype=jnp.float32)
    out2 = jax.block_until_ready(embedding_forward(x2, w2, b2))
    ref2 = reference_forward(x2, w2, b2)
    assert out2.shape == (B2, N2, D2)
    assert jnp.allclose(out2, ref2, atol=1e-5, rtol=1e-5)

    # 3) Folded lane-dense path at scale (small d_model, N multiple of 128, tiled N grid).
    B3, N3, D3 = 32, 256, 32
    k4, k5, k6 = jax.random.split(jax.random.PRNGKey(2), 3)
    w3 = jax.random.uniform(k4, (N3, D3), jnp.float32, minval=-1.0, maxval=1.0)
    b3 = jax.random.uniform(k5, (N3, D3), jnp.float32, minval=-1.0, maxval=1.0)
    x3 = jax.random.normal(k6, (B3, N3, 1), dtype=jnp.float32)
    out3 = jax.block_until_ready(embedding_forward(x3, w3, b3))
    ref3 = reference_forward(x3, w3, b3)
    assert out3.shape == (B3, N3, D3)
    assert jnp.allclose(out3, ref3, atol=1e-5, rtol=1e-5)

    print("KERNEL_OK")
</pallas_src>

<mosaic_0001>
module attributes {stable_mosaic.version = 11 : i64} {
  func.func @_embedding_kernel_folded(%arg0: i32, %arg1: i32, %arg2: memref<2x4xf32, #tpu.memory_space<vmem>>, %arg3: memref<4x128xf32, #tpu.memory_space<vmem>>, %arg4: memref<1x128xf32, #tpu.memory_space<vmem>>, %arg5: memref<1x128xf32, #tpu.memory_space<vmem>>, %arg6: memref<2x128xf32, #tpu.memory_space<vmem>>) attributes {dimension_semantics = [#tpu.dimension_semantics<parallel>, #tpu.dimension_semantics<parallel>], iteration_bounds = array<i64: 1, 1>, scalar_prefetch = 0 : i64, scratch_operands = 0 : i64, tpu.core_type = #tpu.core_type<tc>, window_params = [{transform_indices = @transform_0, window_bounds = array<i64: 2, 4>}, {pipeline_mode = #tpu.pipeline_mode<synchronous>, transform_indices = @transform_1, window_bounds = array<i64: 4, 128>}, {transform_indices = @transform_2, window_bounds = array<i64: 1, 128>}, {transform_indices = @transform_3, window_bounds = array<i64: 1, 128>}, {transform_indices = @transform_4, window_bounds = array<i64: 2, 128>}]} {
    %c0 = arith.constant 0 : index
    %c0_0 = arith.constant 0 : index
    %0 = vector.load %arg2[%c0, %c0_0] : memref<2x4xf32, #tpu.memory_space<vmem>>, vector<2x4xf32>
    %c0_1 = arith.constant 0 : index
    %c0_2 = arith.constant 0 : index
    %1 = vector.load %arg3[%c0_1, %c0_2] : memref<4x128xf32, #tpu.memory_space<vmem>>, vector<4x128xf32>
    %cst = arith.constant dense<0.000000e+00> : vector<2x128xf32>
    %2 = tpu.matmul %0, %1, %cst {dimension_numbers = #tpu.dot_dimension_numbers<[1], [0], [0], [1], [0, 0, 1, 1], [], []>} : vector<2x4xf32>, vector<4x128xf32>, vector<2x128xf32> -> vector<2x128xf32>
    %c0_3 = arith.constant 0 : index
    %c0_4 = arith.constant 0 : index
    %3 = vector.load %arg4[%c0_3, %c0_4] : memref<1x128xf32, #tpu.memory_space<vmem>>, vector<1x128xf32>
    %c0_5 = arith.constant 0 : index
    %c0_6 = arith.constant 0 : index
    %4 = vector.load %arg5[%c0_5, %c0_6] : memref<1x128xf32, #tpu.memory_space<vmem>>, vector<1x128xf32>
    %5 = vector.broadcast %3 : vector<1x128xf32> to vector<2x128xf32>
    %6 = arith.mulf %2, %5 : vector<2x128xf32>
    %7 = vector.broadcast %4 : vector<1x128xf32> to vector<2x128xf32>
    %8 = arith.addf %6, %7 : vector<2x128xf32>
    %c0_7 = arith.constant 0 : index
    %c0_8 = arith.constant 0 : index
    %9 = vector.load %arg6[%c0_7, %c0_8] : memref<2x128xf32, #tpu.memory_space<vmem>>, vector<2x128xf32>
    tpu.vector_store %arg6[%c0_7, %c0_8], %8 {strides = array<i32>} : memref<2x128xf32, #tpu.memory_space<vmem>>, vector<2x128xf32>,
    return
  }
  func.func @transform_0(%arg0: i32, %arg1: i32) -> (i32, i32) {
    %c0_i32 = arith.constant 0 : i32
    return %arg1, %arg0 : i32, i32
  }
  func.func @transform_1(%arg0: i32, %arg1: i32) -> (i32, i32) {
    %c0_i32 = arith.constant 0 : i32
    %c0_i32_0 = arith.constant 0 : i32
    %c0_i32_1 = arith.constant 0 : i32
    return %c0_i32, %c0_i32_0 : i32, i32
  }
  func.func @transform_2(%arg0: i32, %arg1: i32) -> (i32, i32) {
    %c0_i32 = arith.constant 0 : i32
    %c0_i32_0 = arith.constant 0 : i32
    return %c0_i32, %arg0 : i32, i32
  }
  func.func @transform_3(%arg0: i32, %arg1: i32) -> (i32, i32) {
    %c0_i32 = arith.constant 0 : i32
    %c0_i32_0 = arith.constant 0 : i32
    return %c0_i32, %arg0 : i32, i32
  }
  func.func @transform_4(%arg0: i32, %arg1: i32) -> (i32, i32) {
    %c0_i32 = arith.constant 0 : i32
    return %arg1, %arg0 : i32, i32
  }
}

</mosaic_0001>

<llo_original>
// kernel: tpu_custom_call.1
$region0: #{tpu_custom_call.1}
  #allocation0 [shape = 'u32[]', space=smem, size = 0x4, offset = 0x4, fixed_abs, tag = 'smem constant byte address 0x4 - core index']
  #allocation1 [shape = 'u32[144,128]{1,0:T(1,128)}', space=vmem, size = 0x12000, scoped, tag = 'internal scratch']
  %s0 = inlined_call_operand.hbm [shape: f32[2,4], index: 0, kind: input, shape index: {}]
  %s1 = inlined_call_operand.hbm [shape: f32[4,128], index: 1, kind: input, shape index: {}]
  %s2 = inlined_call_operand.vmem [shape: f32[1,128], index: 2, kind: input, shape index: {}]
  %s3 = inlined_call_operand.vmem [shape: f32[1,128], index: 3, kind: input, shape index: {}]
  %s4 = inlined_call_operand.hbm [shape: f32[2,128], index: 4, kind: output, shape index: {}]
  %s5 = sld [smem:[#allocation0]]
  $region34: #{tpu_custom_call.1} parent=0
    _
  %s7 = ssub.s32 1, %s5
  %s8 = scalar_select 0, %s7, %s5
  $region1: #{tpu_custom_call.1} parent=0
    #allocation2 [shape = 'u8[1024]{0}', space=vmem, size = 0x400, scoped, tag = 'input window, operand 0, single buffered']
    #allocation3 [shape = 's32[1]{0}', space=sflag, size = 0x4, scoped, tag = 'scoped memory for tpu_custom_call.1']
    #allocation4 [shape = 's32[1]{0}', space=sflag, size = 0x4, scoped, tag = 'scoped memory for tpu_custom_call.1']
    #allocation5 [shape = 'u8[2048]{0}', space=vmem, size = 0x800, scoped, tag = 'input window, operand 1, single buffered']
    #allocation6 [shape = 's32[1]{0}', space=sflag, size = 0x4, scoped, tag = 'scoped memory for tpu_custom_call.1']
    #allocation7 [shape = 'u8[1024]{0}', space=vmem, size = 0x400, scoped, tag = 'output window, operand 0, single buffered']
    %9 = vsyncpa [#allocation3], 0
    %10 = vsyncpa [#allocation6], 0
    %11 = vsyncpa [#allocation4], 0
    // Predicated region
    $region2: #{tpu_custom_call.1} parent=1 // pred_check
      _
    $region3: #{tpu_custom_call.1} parent=1 // pred_check_branch
      %13 = sbr.rel (0) target = $region5
    $region4: #{tpu_custom_call.1} parent=1 // pred_region
      %s15 = ssub.s32 32, 32
      %16 = vsyncadd [#allocation3], %s15
      %s18 = sshll.u32 [#allocation2], 4
      %s19 = int_to_ptr.vmem [resolvable:$true] %s18
      %21 = dma.hbm_to_vmem [thread:$0]  %s0, 32, %s19, [#allocation3]
    $region5: #{tpu_custom_call.1} parent=1 // pred_fallthru
      _
    // Predicated region
    $region6: #{tpu_custom_call.1} parent=1 // pred_check
      _
    $region7: #{tpu_custom_call.1} parent=1 // pred_check_branch
      %23 = sbr.rel (0) target = $region9
    $region8: #{tpu_custom_call.1} parent=1 // pred_region
      %s25 = ssub.s32 64, 64
      %26 = vsyncadd [#allocation6], %s25
      %s28 = sshll.u32 [#allocation5], 4
      %s29 = int_to_ptr.vmem [resolvable:$true] %s28
      %31 = dma.hbm_to_vmem [thread:$0]  %s1, 64, %s29, [#allocation6]
    $region9: #{tpu_custom_call.1} parent=1 // pred_fallthru
      _
    // Predicated region
    $region10: #{tpu_custom_call.1} parent=1 // pred_check
      _
    $region11: #{tpu_custom_call.1} parent=1 // pred_check_branch
      %33 = sbr.rel (0) target = $region13
    $region12: #{tpu_custom_call.1} parent=1 // pred_region
      _
    $region13: #{tpu_custom_call.1} parent=1 // pred_fallthru
      _
    // Predicated region
    $region14: #{tpu_custom_call.1} parent=1 // pred_check
      _
    $region15: #{tpu_custom_call.1} parent=1 // pred_check_branch
      %35 = sbr.rel (0) target = $region17
    $region16: #{tpu_custom_call.1} parent=1 // pred_region
      _
    $region17: #{tpu_custom_call.1} parent=1 // pred_fallthru
      _
    // Predicated region
    $region18: #{tpu_custom_call.1} parent=1 // pred_check
      _
    $region19: #{tpu_custom_call.1} parent=1 // pred_check_branch
      %37 = sbr.rel (0) target = $region21
    $region20: #{tpu_custom_call.1} parent=1 // pred_region
      %38 = dma.done [#allocation3], 32
    $region21: #{tpu_custom_call.1} parent=1 // pred_fallthru
      _
    // Predicated region
    $region22: #{tpu_custom_call.1} parent=1 // pred_check
      _
    $region23: #{tpu_custom_call.1} parent=1 // pred_check_branch
      %40 = sbr.rel (0) target = $region25
    $region24: #{tpu_custom_call.1} parent=1 // pred_region
      %41 = dma.done [#allocation6], 64
    $region25: #{tpu_custom_call.1} parent=1 // pred_fallthru
      _
    %v42 = vld [vmem:[#allocation2] sm:$0x3]
    %v43 = vld [vmem:[#allocation5] sm:$0xf]
    %vm44 = vcmask 31744
    %v46 = vsel %vm44, %v42, 0
    %vm48 = vcmask 1043456
    %v50 = vsel %vm48, %v43, 0
    %52 = vmatprep.subr.mxu0 0.0
    %53 = vmatpush1.msra.mxu0 %v50
    %54 = vmatprep.subr.mxu0 0.0
    %55 = vmatpush1.msra.mxu0 0.0
    %56 = vmatprep.subr.mxu0 0.0
    %57 = vmatpush1.msra.mxu0 0.0
    %58 = vmatprep.subr.mxu0 0.0
    %59 = vmatpush1.msra.mxu0 0.0
    %60 = vmatprep.subr.mxu0 0.0
    %61 = vmatpush1.msra.mxu0 0.0
    %62 = vmatprep.subr.mxu0 0.0
    %63 = vmatpush1.msra.mxu0 0.0
    %64 = vmatprep.subr.mxu0 0.0
    %65 = vmatpush1.msra.mxu0 0.0
    %66 = vmatprep.subr.mxu0 0.0
    %67 = vmatpush1.msra.mxu0 0.0
    %68 = vmatprep.subr.mxu0 0.0
    %69 = vmatpush1.msra.mxu0 0.0
    %70 = vmatprep.subr.mxu0 0.0
    %71 = vmatpush1.msra.mxu0 0.0
    %72 = vmatprep.subr.mxu0 0.0
    %73 = vmatpush1.msra.mxu0 0.0
    %74 = vmatprep.subr.mxu0 0.0
    %75 = vmatpush1.msra.mxu0 0.0
    %76 = vmatprep.subr.mxu0 0.0
    %77 = vmatpush1.msra.mxu0 0.0
    %78 = vmatprep.subr.mxu0 0.0
    %79 = vmatpush1.msra.mxu0 0.0
    %80 = vmatprep.subr.mxu0 0.0
    %81 = vmatpush1.msra.mxu0 0.0
    %82 = vmatprep.subr.mxu0 0.0
    %83 = vmatpush1.msra.mxu0 0.0
    %84 = vmatprep.subr.mxu0 0.0
    %85 = vmatpush1.msra.mxu0 0.0
    %86 = vmatprep.subr.mxu0 0.0
    %87 = vmatpush1.msra.mxu0 0.0
    %88 = vmatprep.subr.mxu0 0.0
    %89 = vmatpush1.msra.mxu0 0.0
    %90 = vmatprep.subr.mxu0 0.0
    %91 = vmatpush1.msra.mxu0 0.0
    %92 = vmatprep.subr.mxu0 0.0
    %93 = vmatpush1.msra.mxu0 0.0
    %94 = vmatprep.subr.mxu0 0.0
    %95 = vmatpush1.msra.mxu0 0.0
    %96 = vmatprep.subr.mxu0 0.0
    %97 = vmatpush1.msra.mxu0 0.0
    %98 = vmatprep.subr.mxu0 0.0
    %99 = vmatpush1.msra.mxu0 0.0
    %100 = vmatprep.subr.mxu0 0.0
    %101 = vmatpush1.msra.mxu0 0.0
    %102 = vmatprep.subr.mxu0 0.0
    %103 = vmatpush1.msra.mxu0 0.0
    %104 = vmatprep.subr.mxu0 0.0
    %105 = vmatpush1.msra.mxu0 0.0
    %106 = vmatprep.subr.mxu0 0.0
    %107 = vmatpush1.msra.mxu0 0.0
    %108 = vmatprep.subr.mxu0 0.0
    %109 = vmatpush1.msra.mxu0 0.0
    %110 = vmatprep.subr.mxu0 0.0
    %111 = vmatpush1.msra.mxu0 0.0
    %112 = vmatprep.subr.mxu0 0.0
    %113 = vmatpush1.msra.mxu0 0.0
    %114 = vmatprep.subr.mxu0 0.0
    %115 = vmatpush1.msra.mxu0 0.0
    %116 = vmatprep.mubr.f32.mxu0 0.0
    %117 = vmatmul.mubr.f32.gmra.mrb[0].mxu0 %v46
    %v118 = vpop.f32.mrb[0].mxu0
    %v119 = vadd.f32 0.0, %v118
    %v120 = vpop.f32.mrb[0].mxu0
    %121 = vdwg.mxu0
    %v122 = vld [vmem:[%s2] sm:$0x1]
    %v123 = vld [vmem:[%s3] sm:$0x1]
    %v125 = vlaneseq
    %v126 = vshrl.u32 %v125, 7
    %v127 = vsub.s32 0, %v126
    %v128 = vrot.slane %v122, %v127
    %v130 = vmul.f32 %v119, %v128
    %v132 = vlaneseq
    %v133 = vshrl.u32 %v132, 7
    %v134 = vsub.s32 0, %v133
    %v135 = vrot.slane %v123, %v134
    %v137 = vadd.f32 %v130, %v135
    %138 = vst [vmem:[#allocation7] sm:$0x3] %v137
    // Predicated region
    $region26: #{tpu_custom_call.1} parent=1 // pred_check
      _
    $region27: #{tpu_custom_call.1} parent=1 // pred_check_branch
      %140 = sbr.rel (0) target = $region29
    $region28: #{tpu_custom_call.1} parent=1 // pred_region
      %s142 = ssub.s32 32, 32
      %143 = vsyncadd [#allocation4], %s142
      %s145 = sshll.u32 [#allocation7], 4
      %s146 = int_to_ptr.vmem [resolvable:$true] %s145
      %148 = dma.vmem_to_hbm [thread:$0]  %s146, 32, %s4, [#allocation4]
    $region29: #{tpu_custom_call.1} parent=1 // pred_fallthru
      _
    // Predicated region
    $region30: #{tpu_custom_call.1} parent=1 // pred_check
      _
    $region31: #{tpu_custom_call.1} parent=1 // pred_check_branch
      %150 = sbr.rel (0) target = $region33
    $region32: #{tpu_custom_call.1} parent=1 // pred_region
      %151 = dma.done [#allocation4], 32
    $region33: #{tpu_custom_call.1} parent=1 // pred_fallthru
      _
    %152 = vsyncpa [#allocation3], 1
    %153 = vsyncpa [#allocation6], 1
    %154 = vsyncpa [#allocation4], 1

</llo_original>
